<compile_context>
chip_gen: v7x
topology: tpu7x:2x2x1
jax: 0.10.0
libtpu: 0.0.40
codegen_flags: <defaults>
</compile_context>

<pallas_src>
import functools
import math

import jax
import jax.numpy as jnp
from jax.experimental import pallas as pl
from jax.experimental.pallas import tpu as pltpu

LOG_STD_MIN = -20.0
LOG_STD_MAX = 2.0
_HALF_LOG_2PI = 0.5 * math.log(2.0 * math.pi)
_LOG2 = math.log(2.0)


def _softplus(x):
    # Numerically stable softplus (EUP exp + log1p, VPU max/abs).
    return jnp.maximum(x, 0.0) + jnp.log1p(jnp.exp(-jnp.abs(x)))


def _actor_kernel(obs_ref, w1_ref, b1_ref, w2_ref, b2_ref, wh_ref, bh_ref,
                  *rest, act_dim, deterministic):
    # rest = (out_ref,) in deterministic mode, (eps_ref, out_ref) otherwise.
    if deterministic:
        (out_ref,) = rest
        eps = None
    else:
        eps_ref, out_ref = rest
        eps = eps_ref[...]                                  # [act_dim, Bt]

    x = obs_ref[...]                                        # [obs_dim, Bt]

    # MLP trunk: Linear -> ReLU -> Linear -> ReLU (output_activation == ReLU).
    h1 = jnp.dot(w1_ref[...], x, preferred_element_type=jnp.float32) + b1_ref[...]
    h1 = jnp.maximum(h1, 0.0)
    h2 = jnp.dot(w2_ref[...], h1, preferred_element_type=jnp.float32) + b2_ref[...]
    h2 = jnp.maximum(h2, 0.0)

    # Fused output heads: [2*act_dim, hidden] @ [hidden, Bt] in one MXU pass.
    heads = jnp.dot(wh_ref[...], h2, preferred_element_type=jnp.float32) + bh_ref[...]
    mu = heads[:act_dim, :]
    log_std = jnp.clip(heads[act_dim:, :], LOG_STD_MIN, LOG_STD_MAX)

    if deterministic:
        # pi == mu  =>  z = (pi - mu)/std == 0; std itself is never needed.
        pi_action = mu
        log_prob = -log_std - _HALF_LOG_2PI
    else:
        std = jnp.exp(log_std)
        pi_action = mu + std * eps
        # z = (pi - mu)/std == eps exactly -> skip the subtract + divide.
        log_prob = -0.5 * (eps * eps) - log_std - _HALF_LOG_2PI

    # Tanh-squash correction, fused with log_prob into a single reduction.
    corr = 2.0 * (_LOG2 - pi_action - _softplus(-2.0 * pi_action))
    logp_pi = jnp.sum(log_prob - corr, axis=0, keepdims=True)      # [1, Bt]

    # One packed, lane-dense output store: rows [0:act_dim] = tanh(pi),
    # row [act_dim] = logp_pi.
    out_ref[...] = jnp.concatenate([jnp.tanh(pi_action), logp_pi], axis=0)


def squashed_gaussian_actor_forward(obs, params, eps=None, *,
                                    deterministic=False, batch_tile=512):
    """Runs the Pallas kernel.

    obs: [B, obs_dim]; eps: [B, act_dim] (ignored / may be None when
    deterministic). Returns (pi_action [B, act_dim], logp_pi [B]).
    """
    B, obs_dim = obs.shape
    h1 = params["w1"].shape[0]
    h2 = params["w2"].shape[0]
    act_dim = params["w_mu"].shape[0]

    # Feature-major presentation: batch on the lane axis.
    obs_t = obs.T                                                     # [obs_dim, B]
    w_heads = jnp.concatenate([params["w_mu"], params["w_ls"]], axis=0)  # [2A, h2]
    b_heads = jnp.concatenate([params["b_mu"], params["b_ls"]], axis=0)  # [2A, 1]

    kernel = functools.partial(_actor_kernel, act_dim=act_dim,
                               deterministic=deterministic)

    args = [obs_t, params["w1"], params["b1"], params["w2"], params["b2"],
            w_heads, b_heads]
    if not deterministic:
        args.append(eps.T)                                            # [act_dim, B]

    out_shape = jax.ShapeDtypeStruct((act_dim + 1, B), jnp.float32)

    if B > batch_tile and B % batch_tile == 0:
        # Batch grid (lane axis), marked parallel: shards across the two
        # TensorCores on v7x and bounds the VMEM working set for big batches.
        full = lambda i: (0, 0)
        tiled = lambda i: (0, i)
        in_specs = [
            pl.BlockSpec((obs_dim, batch_tile), tiled),
            pl.BlockSpec((h1, obs_dim), full),
            pl.BlockSpec((h1, 1), full),
            pl.BlockSpec((h2, h1), full),
            pl.BlockSpec((h2, 1), full),
            pl.BlockSpec((2 * act_dim, h2), full),
            pl.BlockSpec((2 * act_dim, 1), full),
        ]
        if not deterministic:
            in_specs.append(pl.BlockSpec((act_dim, batch_tile), tiled))
        out = pl.pallas_call(
            kernel,
            out_shape=out_shape,
            grid=(B // batch_tile,),
            in_specs=in_specs,
            out_specs=pl.BlockSpec((act_dim + 1, batch_tile), tiled),
            compiler_params=pltpu.CompilerParams(
                dimension_semantics=("parallel",)),
        )(*args)
    else:
        # Small batch: one full-array VMEM block, no grid (no per-step overhead).
        vmem = pl.BlockSpec(memory_space=pltpu.MemorySpace.VMEM)
        out = pl.pallas_call(
            kernel,
            out_shape=out_shape,
            in_specs=[vmem] * len(args),
            out_specs=vmem,
        )(*args)

    pi_action = out[:act_dim, :].T        # [B, act_dim]
    logp_pi = out[act_dim, :]             # [B]
    return pi_action, logp_pi


def init_params(key, obs_dim, hidden_sizes, act_dim):
    """Synthetic params in PyTorch-native layout: weights [out, in], biases [out, 1]."""
    sizes = [obs_dim] + list(hidden_sizes)
    keys = jax.random.split(key, 8)
    return {
        "w1": 0.1 * jax.random.normal(keys[0], (sizes[1], sizes[0]), jnp.float32),
        "b1": 0.1 * jax.random.normal(keys[1], (sizes[1], 1), jnp.float32),
        "w2": 0.1 * jax.random.normal(keys[2], (sizes[2], sizes[1]), jnp.float32),
        "b2": 0.1 * jax.random.normal(keys[3], (sizes[2], 1), jnp.float32),
        "w_mu": 0.1 * jax.random.normal(keys[4], (act_dim, sizes[2]), jnp.float32),
        "b_mu": 0.1 * jax.random.normal(keys[5], (act_dim, 1), jnp.float32),
        "w_ls": 0.1 * jax.random.normal(keys[6], (act_dim, sizes[2]), jnp.float32),
        "b_ls": 0.1 * jax.random.normal(keys[7], (act_dim, 1), jnp.float32),
    }


def _reference_forward(obs, params, eps, deterministic=False):
    """Pure-JAX reference of the PyTorch forward (for correctness check)."""
    h1 = jnp.maximum(obs @ params["w1"].T + params["b1"].T, 0.0)
    h2 = jnp.maximum(h1 @ params["w2"].T + params["b2"].T, 0.0)
    mu = h2 @ params["w_mu"].T + params["b_mu"].T
    log_std = jnp.clip(h2 @ params["w_ls"].T + params["b_ls"].T,
                       LOG_STD_MIN, LOG_STD_MAX)
    std = jnp.exp(log_std)
    pi = mu if deterministic else mu + std * eps
    z = (pi - mu) / std
    logp = jnp.sum(-0.5 * z * z - log_std - 0.5 * jnp.log(2.0 * jnp.pi), axis=-1)
    logp = logp - jnp.sum(
        2.0 * (jnp.log(2.0) - pi - jax.nn.softplus(-2.0 * pi)), axis=-1)
    return jnp.tanh(pi), logp


if __name__ == "__main__":
    # Small, forward-consistent shapes.
    batch, obs_dim, act_dim = 4, 16, 8
    hidden_sizes = (32, 32)

    key = jax.random.PRNGKey(0)
    k_obs, k_eps, k_params, k_obs2, k_eps2 = jax.random.split(key, 5)

    obs = jax.random.normal(k_obs, (batch, obs_dim), jnp.float32)
    eps = jax.random.normal(k_eps, (batch, act_dim), jnp.float32)  # rsample noise
    params = init_params(k_params, obs_dim, hidden_sizes, act_dim)

    # Stochastic path (gridless, full-array VMEM block).
    pi_action, logp_pi = squashed_gaussian_actor_forward(
        obs, params, eps, deterministic=False)
    jax.block_until_ready((pi_action, logp_pi))
    ref_act, ref_logp = _reference_forward(obs, params, eps, deterministic=False)
    assert jnp.allclose(pi_action, ref_act, atol=1e-5, rtol=1e-5)
    assert jnp.allclose(logp_pi, ref_logp, atol=1e-4, rtol=1e-4)

    # Deterministic path (no eps DMA, no exp).
    pi_det, logp_det = squashed_gaussian_actor_forward(
        obs, params, deterministic=True)
    jax.block_until_ready((pi_det, logp_det))
    ref_act_d, ref_logp_d = _reference_forward(obs, params, eps, deterministic=True)
    assert jnp.allclose(pi_det, ref_act_d, atol=1e-5, rtol=1e-5)
    assert jnp.allclose(logp_det, ref_logp_d, atol=1e-4, rtol=1e-4)

    # Batch-grid path (parallel over batch tiles on the lane axis).
    big_b = 256
    obs_big = jax.random.normal(k_obs2, (big_b, obs_dim), jnp.float32)
    eps_big = jax.random.normal(k_eps2, (big_b, act_dim), jnp.float32)
    pi_big, logp_big = squashed_gaussian_actor_forward(
        obs_big, params, eps_big, deterministic=False, batch_tile=128)
    jax.block_until_ready((pi_big, logp_big))
    ref_act_b, ref_logp_b = _reference_forward(obs_big, params, eps_big,
                                               deterministic=False)
    assert jnp.allclose(pi_big, ref_act_b, atol=1e-5, rtol=1e-5)
    assert jnp.allclose(logp_big, ref_logp_b, atol=1e-4, rtol=1e-4)

    print("KERNEL_OK")
</pallas_src>

<mosaic_0001>
module attributes {stable_mosaic.version = 11 : i64} {
  func.func @_actor_kernel(%arg0: memref<16x4xf32, #tpu.memory_space<vmem>>, %arg1: memref<32x16xf32, #tpu.memory_space<vmem>>, %arg2: memref<32x1xf32, #tpu.memory_space<vmem>>, %arg3: memref<32x32xf32, #tpu.memory_space<vmem>>, %arg4: memref<32x1xf32, #tpu.memory_space<vmem>>, %arg5: memref<16x32xf32, #tpu.memory_space<vmem>>, %arg6: memref<16x1xf32, #tpu.memory_space<vmem>>, %arg7: memref<8x4xf32, #tpu.memory_space<vmem>>, %arg8: memref<9x4xf32, #tpu.memory_space<vmem>>) attributes {dimension_semantics = [], scalar_prefetch = 0 : i64, scratch_operands = 0 : i64, tpu.core_type = #tpu.core_type<tc>} {
    %c0 = arith.constant 0 : index
    %c0_0 = arith.constant 0 : index
    %0 = vector.load %arg7[%c0, %c0_0] : memref<8x4xf32, #tpu.memory_space<vmem>>, vector<8x4xf32>
    %c0_1 = arith.constant 0 : index
    %c0_2 = arith.constant 0 : index
    %1 = vector.load %arg0[%c0_1, %c0_2] : memref<16x4xf32, #tpu.memory_space<vmem>>, vector<16x4xf32>
    %c0_3 = arith.constant 0 : index
    %c0_4 = arith.constant 0 : index
    %2 = vector.load %arg1[%c0_3, %c0_4] : memref<32x16xf32, #tpu.memory_space<vmem>>, vector<32x16xf32>
    %cst = arith.constant dense<0.000000e+00> : vector<32x4xf32>
    %3 = tpu.matmul %2, %1, %cst {dimension_numbers = #tpu.dot_dimension_numbers<[1], [0], [0], [1], [0, 0, 1, 1], [], []>} : vector<32x16xf32>, vector<16x4xf32>, vector<32x4xf32> -> vector<32x4xf32>
    %c0_5 = arith.constant 0 : index
    %c0_6 = arith.constant 0 : index
    %4 = vector.load %arg2[%c0_5, %c0_6] : memref<32x1xf32, #tpu.memory_space<vmem>>, vector<32x1xf32>
    %5 = vector.broadcast %4 : vector<32x1xf32> to vector<32x4xf32>
    %6 = arith.addf %3, %5 : vector<32x4xf32>
    %cst_7 = arith.constant 0.000000e+00 : f32
    %7 = vector.broadcast %cst_7 : f32 to vector<32x4xf32>
    %8 = arith.maximumf %6, %7 : vector<32x4xf32>
    %c0_8 = arith.constant 0 : index
    %c0_9 = arith.constant 0 : index
    %9 = vector.load %arg3[%c0_8, %c0_9] : memref<32x32xf32, #tpu.memory_space<vmem>>, vector<32x32xf32>
    %cst_10 = arith.constant dense<0.000000e+00> : vector<32x4xf32>
    %10 = tpu.matmul %9, %8, %cst_10 {dimension_numbers = #tpu.dot_dimension_numbers<[1], [0], [0], [1], [0, 0, 1, 1], [], []>} : vector<32x32xf32>, vector<32x4xf32>, vector<32x4xf32> -> vector<32x4xf32>
    %c0_11 = arith.constant 0 : index
    %c0_12 = arith.constant 0 : index
    %11 = vector.load %arg4[%c0_11, %c0_12] : memref<32x1xf32, #tpu.memory_space<vmem>>, vector<32x1xf32>
    %12 = vector.broadcast %11 : vector<32x1xf32> to vector<32x4xf32>
    %13 = arith.addf %10, %12 : vector<32x4xf32>
    %cst_13 = arith.constant 0.000000e+00 : f32
    %14 = vector.broadcast %cst_13 : f32 to vector<32x4xf32>
    %15 = arith.maximumf %13, %14 : vector<32x4xf32>
    %c0_14 = arith.constant 0 : index
    %c0_15 = arith.constant 0 : index
    %16 = vector.load %arg5[%c0_14, %c0_15] : memref<16x32xf32, #tpu.memory_space<vmem>>, vector<16x32xf32>
    %cst_16 = arith.constant dense<0.000000e+00> : vector<16x4xf32>
    %17 = tpu.matmul %16, %15, %cst_16 {dimension_numbers = #tpu.dot_dimension_numbers<[1], [0], [0], [1], [0, 0, 1, 1], [], []>} : vector<16x32xf32>, vector<32x4xf32>, vector<16x4xf32> -> vector<16x4xf32>
    %c0_17 = arith.constant 0 : index
    %c0_18 = arith.constant 0 : index
    %18 = vector.load %arg6[%c0_17, %c0_18] : memref<16x1xf32, #tpu.memory_space<vmem>>, vector<16x1xf32>
    %19 = vector.broadcast %18 : vector<16x1xf32> to vector<16x4xf32>
    %20 = arith.addf %17, %19 : vector<16x4xf32>
    %21 = vector.extract_strided_slice %20 {offsets = [0, 0], sizes = [8, 4], strides = [1, 1]} : vector<16x4xf32> to vector<8x4xf32>
    %22 = vector.extract_strided_slice %20 {offsets = [8, 0], sizes = [8, 4], strides = [1, 1]} : vector<16x4xf32> to vector<8x4xf32>
    %cst_19 = arith.constant -2.000000e+01 : f32
    %cst_20 = arith.constant 2.000000e+00 : f32
    %23 = vector.broadcast %cst_19 : f32 to vector<8x4xf32>
    %24 = arith.maximumf %23, %22 : vector<8x4xf32>
    %25 = vector.broadcast %cst_20 : f32 to vector<8x4xf32>
    %26 = arith.minimumf %25, %24 : vector<8x4xf32>
    %27 = math.exp %26 : vector<8x4xf32>
    %28 = arith.mulf %27, %0 : vector<8x4xf32>
    %29 = arith.addf %21, %28 : vector<8x4xf32>
    %30 = arith.mulf %0, %0 : vector<8x4xf32>
    %cst_21 = arith.constant -5.000000e-01 : f32
    %31 = vector.broadcast %cst_21 : f32 to vector<8x4xf32>
    %32 = arith.mulf %31, %30 : vector<8x4xf32>
    %33 = arith.subf %32, %26 : vector<8x4xf32>
    %cst_22 = arith.constant 0.918938517 : f32
    %34 = vector.broadcast %cst_22 : f32 to vector<8x4xf32>
    %35 = arith.subf %33, %34 : vector<8x4xf32>
    %cst_23 = arith.constant 0.693147182 : f32
    %36 = vector.broadcast %cst_23 : f32 to vector<8x4xf32>
    %37 = arith.subf %36, %29 : vector<8x4xf32>
    %cst_24 = arith.constant -2.000000e+00 : f32
    %38 = vector.broadcast %cst_24 : f32 to vector<8x4xf32>
    %39 = arith.mulf %38, %29 : vector<8x4xf32>
    %cst_25 = arith.constant 0.000000e+00 : f32
    %40 = vector.broadcast %cst_25 : f32 to vector<8x4xf32>
    %41 = arith.maximumf %39, %40 : vector<8x4xf32>
    %42 = math.absf %39 : vector<8x4xf32>
    %cst_26 = arith.constant 0.000000e+00 : f32
    %43 = vector.broadcast %cst_26 : f32 to vector<8x4xf32>
    %44 = arith.subf %43, %42 : vector<8x4xf32>
    %45 = math.exp %44 : vector<8x4xf32>
    %46 = math.log1p %45 : vector<8x4xf32>
    %47 = arith.addf %41, %46 : vector<8x4xf32>
    %48 = arith.subf %37, %47 : vector<8x4xf32>
    %cst_27 = arith.constant 2.000000e+00 : f32
    %49 = vector.broadcast %cst_27 : f32 to vector<8x4xf32>
    %50 = arith.mulf %49, %48 : vector<8x4xf32>
    %51 = arith.subf %35, %50 : vector<8x4xf32>
    %cst_28 = arith.constant dense<0.000000e+00> : vector<4xf32>
    %52 = vector.multi_reduction <add>, %51, %cst_28 [0] : vector<8x4xf32> to vector<4xf32>
    %53 = vector.shape_cast %52 : vector<4xf32> to vector<1x4xf32>
    %54 = math.tanh %29 : vector<8x4xf32>
    %55 = tpu.concatenate %54, %53 in 0 : vector<8x4xf32>, vector<1x4xf32> -> vector<9x4xf32>
    %c0_29 = arith.constant 0 : index
    %c0_30 = arith.constant 0 : index
    %56 = vector.load %arg8[%c0_29, %c0_30] : memref<9x4xf32, #tpu.memory_space<vmem>>, vector<9x4xf32>
    tpu.vector_store %arg8[%c0_29, %c0_30], %55 {strides = array<i32>} : memref<9x4xf32, #tpu.memory_space<vmem>>, vector<9x4xf32>,
    return
  }
}

</mosaic_0001>

<llo_original>
// kernel: tpu_custom_call.1
$region0: #{tpu_custom_call.1}
  #allocation0 [shape = 'u32[]', space=smem, size = 0x4, offset = 0x4, fixed_abs, tag = 'smem constant byte address 0x4 - core index']
  #allocation1 [shape = 'u32[144,128]{1,0:T(1,128)}', space=vmem, size = 0x12000, scoped, tag = 'internal scratch']
  %s0 = inlined_call_operand.vmem [shape: f32[16,4], index: 0, kind: input, shape index: {}]
  %s1 = inlined_call_operand.vmem [shape: f32[32,16], index: 1, kind: input, shape index: {}]
  %s2 = inlined_call_operand.vmem [shape: f32[32,1], index: 2, kind: input, shape index: {}]
  %s3 = inlined_call_operand.vmem [shape: f32[32,32], index: 3, kind: input, shape index: {}]
  %s4 = inlined_call_operand.vmem [shape: f32[32,1], index: 4, kind: input, shape index: {}]
  %s5 = inlined_call_operand.vmem [shape: f32[16,32], index: 5, kind: input, shape index: {}]
  %s6 = inlined_call_operand.vmem [shape: f32[16,1], index: 6, kind: input, shape index: {}]
  %s7 = inlined_call_operand.vmem [shape: f32[8,4], index: 7, kind: input, shape index: {}]
  %s8 = inlined_call_operand.vmem [shape: f32[9,4], index: 8, kind: output, shape index: {}]
  %s9 = sld [smem:[#allocation0]]
  $region42: #{tpu_custom_call.1} parent=0
    _
  %s11 = ssub.s32 1, %s9
  %s12 = scalar_select 0, %s11, %s9
  // Predicated region
  $region2: #{tpu_custom_call.1} parent=0 // pred_check
    _
  $region3: #{tpu_custom_call.1} parent=0 // pred_check_branch
    %14 = sbr.rel (0) target = $region5
  $region4: #{tpu_custom_call.1} parent=0 // pred_region
    _
  $region5: #{tpu_custom_call.1} parent=0 // pred_fallthru
    _
  // Predicated region
  $region6: #{tpu_custom_call.1} parent=0 // pred_check
    _
  $region7: #{tpu_custom_call.1} parent=0 // pred_check_branch
    %16 = sbr.rel (0) target = $region9
  $region8: #{tpu_custom_call.1} parent=0 // pred_region
    _
  $region9: #{tpu_custom_call.1} parent=0 // pred_fallthru
    _
  // Predicated region
  $region10: #{tpu_custom_call.1} parent=0 // pred_check
    _
  $region11: #{tpu_custom_call.1} parent=0 // pred_check_branch
    %18 = sbr.rel (0) target = $region13
  $region12: #{tpu_custom_call.1} parent=0 // pred_region
    _
  $region13: #{tpu_custom_call.1} parent=0 // pred_fallthru
    _
  // Predicated region
  $region14: #{tpu_custom_call.1} parent=0 // pred_check
    _
  $region15: #{tpu_custom_call.1} parent=0 // pred_check_branch
    %20 = sbr.rel (0) target = $region17
  $region16: #{tpu_custom_call.1} parent=0 // pred_region
    _
  $region17: #{tpu_custom_call.1} parent=0 // pred_fallthru
    _
  // Predicated region
  $region18: #{tpu_custom_call.1} parent=0 // pred_check
    _
  $region19: #{tpu_custom_call.1} parent=0 // pred_check_branch
    %22 = sbr.rel (0) target = $region21
  $region20: #{tpu_custom_call.1} parent=0 // pred_region
    _
  $region21: #{tpu_custom_call.1} parent=0 // pred_fallthru
    _
  // Predicated region
  $region22: #{tpu_custom_call.1} parent=0 // pred_check
    _
  $region23: #{tpu_custom_call.1} parent=0 // pred_check_branch
    %24 = sbr.rel (0) target = $region25
  $region24: #{tpu_custom_call.1} parent=0 // pred_region
    _
  $region25: #{tpu_custom_call.1} parent=0 // pred_fallthru
    _
  // Predicated region
  $region26: #{tpu_custom_call.1} parent=0 // pred_check
    _
  $region27: #{tpu_custom_call.1} parent=0 // pred_check_branch
    %26 = sbr.rel (0) target = $region29
  $region28: #{tpu_custom_call.1} parent=0 // pred_region
    _
  $region29: #{tpu_custom_call.1} parent=0 // pred_fallthru
    _
  // Predicated region
  $region30: #{tpu_custom_call.1} parent=0 // pred_check
    _
  $region31: #{tpu_custom_call.1} parent=0 // pred_check_branch
    %28 = sbr.rel (0) target = $region33
  $region32: #{tpu_custom_call.1} parent=0 // pred_region
    _
  $region33: #{tpu_custom_call.1} parent=0 // pred_fallthru
    _
  %v29 = vld [vmem:[%s7] sm:$0xff]
  %v30 = vld [vmem:[%s0] sm:$0xff]
  %v31 = vld [vmem:[%s0 + $0x8] sm:$0xff]
  %v32 = vld [vmem:[%s1] sm:$0xff]
  %v33 = vld [vmem:[%s1 + $0x8] sm:$0xff]
  %v34 = vld [vmem:[%s1 + $0x10] sm:$0xff]
  %v35 = vld [vmem:[%s1 + $0x18] sm:$0xff]
  %v36 = vld [vmem:[%s2] sm:$0xff]
  %v37 = vld [vmem:[%s2 + $0x8] sm:$0xff]
  %v38 = vld [vmem:[%s2 + $0x10] sm:$0xff]
  %v39 = vld [vmem:[%s2 + $0x18] sm:$0xff]
  %41 = vset.pattern.permute.xlu0 0
  %42 = vperm.xlu0 %41, %v36
  %v43 = vpop.permute.xlu0 %42
  %46 = vset.pattern.permute.xlu0 0
  %47 = vperm.xlu0 %46, %v37
  %v48 = vpop.permute.xlu0 %47
  %51 = vset.pattern.permute.xlu0 0
  %52 = vperm.xlu0 %51, %v38
  %v53 = vpop.permute.xlu0 %52
  %56 = vset.pattern.permute.xlu0 0
  %57 = vperm.xlu0 %56, %v39
  %v58 = vpop.permute.xlu0 %57
  %vm60 = vcmask 130048
  %v62 = vsel %vm60, %v32, 0
  %v65 = vsel %vm60, %v33, 0
  %v68 = vsel %vm60, %v34, 0
  %v71 = vsel %vm60, %v35, 0
  %73 = vmatprep.subr.mxu0 0.0
  %74 = vmatpush1.msra.mxu0 %v30
  %75 = vmatprep.subr.mxu0 0.0
  %76 = vmatpush1.msra.mxu0 %v31
  %77 = vmatprep.subr.mxu0 0.0
  %78 = vmatpush1.msra.mxu0 0.0
  %79 = vmatprep.subr.mxu0 0.0
  %80 = vmatpush1.msra.mxu0 0.0
  %81 = vmatprep.subr.mxu0 0.0
  %82 = vmatpush1.msra.mxu0 0.0
  %83 = vmatprep.subr.mxu0 0.0
  %84 = vmatpush1.msra.mxu0 0.0
  %85 = vmatprep.subr.mxu0 0.0
  %86 = vmatpush1.msra.mxu0 0.0
  %87 = vmatprep.subr.mxu0 0.0
  %88 = vmatpush1.msra.mxu0 0.0
  %89 = vmatprep.subr.mxu0 0.0
  %90 = vmatpush1.msra.mxu0 0.0
  %91 = vmatprep.subr.mxu0 0.0
  %92 = vmatpush1.msra.mxu0 0.0
  %93 = vmatprep.subr.mxu0 0.0
  %94 = vmatpush1.msra.mxu0 0.0
  %95 = vmatprep.subr.mxu0 0.0
  %96 = vmatpush1.msra.mxu0 0.0
  %97 = vmatprep.subr.mxu0 0.0
  %98 = vmatpush1.msra.mxu0 0.0
  %99 = vmatprep.subr.mxu0 0.0
  %100 = vmatpush1.msra.mxu0 0.0
  %101 = vmatprep.subr.mxu0 0.0
  %102 = vmatpush1.msra.mxu0 0.0
  %103 = vmatprep.subr.mxu0 0.0
  %104 = vmatpush1.msra.mxu0 0.0
  %105 = vmatprep.subr.mxu0 0.0
  %106 = vmatpush1.msra.mxu0 0.0
  %107 = vmatprep.subr.mxu0 0.0
  %108 = vmatpush1.msra.mxu0 0.0
  %109 = vmatprep.subr.mxu0 0.0
  %110 = vmatpush1.msra.mxu0 0.0
  %111 = vmatprep.subr.mxu0 0.0
  %112 = vmatpush1.msra.mxu0 0.0
  %113 = vmatprep.subr.mxu0 0.0
  %114 = vmatpush1.msra.mxu0 0.0
  %115 = vmatprep.subr.mxu0 0.0
  %116 = vmatpush1.msra.mxu0 0.0
  %117 = vmatprep.subr.mxu0 0.0
  %118 = vmatpush1.msra.mxu0 0.0
  %119 = vmatprep.subr.mxu0 0.0
  %120 = vmatpush1.msra.mxu0 0.0
  %121 = vmatprep.subr.mxu0 0.0
  %122 = vmatpush1.msra.mxu0 0.0
  %123 = vmatprep.subr.mxu0 0.0
  %124 = vmatpush1.msra.mxu0 0.0
  %125 = vmatprep.subr.mxu0 0.0
  %126 = vmatpush1.msra.mxu0 0.0
  %127 = vmatprep.subr.mxu0 0.0
  %128 = vmatpush1.msra.mxu0 0.0
  %129 = vmatprep.subr.mxu0 0.0
  %130 = vmatpush1.msra.mxu0 0.0
  %131 = vmatprep.subr.mxu0 0.0
  %132 = vmatpush1.msra.mxu0 0.0
  %133 = vmatprep.subr.mxu0 0.0
  %134 = vmatpush1.msra.mxu0 0.0
  %135 = vmatprep.subr.mxu0 0.0
  %136 = vmatpush1.msra.mxu0 0.0
  %137 = vmatprep.mubr.f32.mxu0 0.0
  %138 = vmatmul.mubr.f32.gmra.mrb[0].mxu0 %v62
  %v139 = vpop.f32.mrb[0].mxu0
  %v140 = vadd.f32 %v43, %v139
  %v141 = vpop.f32.mrb[0].mxu0
  %142 = vmatprep.mubr.f32.mxu0 0.0
  %143 = vmatmul.mubr.f32.gmra.mrb[0].mxu0 %v65
  %v144 = vpop.f32.mrb[0].mxu0
  %v145 = vadd.f32 %v48, %v144
  %v146 = vpop.f32.mrb[0].mxu0
  %147 = vmatprep.mubr.f32.mxu0 0.0
  %148 = vmatmul.mubr.f32.gmra.mrb[0].mxu0 %v68
  %v149 = vpop.f32.mrb[0].mxu0
  %v150 = vadd.f32 %v53, %v149
  %v151 = vpop.f32.mrb[0].mxu0
  %152 = vmatprep.mubr.f32.mxu0 0.0
  %153 = vmatmul.mubr.f32.gmra.mrb[0].mxu0 %v71
  %v154 = vpop.f32.mrb[0].mxu0
  %v155 = vadd.f32 %v58, %v154
  %v156 = vpop.f32.mrb[0].mxu0
  %157 = vdwg.mxu0
  %v158 = vmax.f32 %v140, 0.0
  %v159 = vmax.f32 %v145, 0.0
  %v160 = vmax.f32 %v150, 0.0
  %v161 = vmax.f32 %v155, 0.0
  %v162 = vld [vmem:[%s3] sm:$0xff]
  %v163 = vld [vmem:[%s3 + $0x8] sm:$0xff]
  %v164 = vld [vmem:[%s3 + $0x10] sm:$0xff]
  %v165 = vld [vmem:[%s3 + $0x18] sm:$0xff]
  %v166 = vld [vmem:[%s4] sm:$0xff]
  %v167 = vld [vmem:[%s4 + $0x8] sm:$0xff]
  %v168 = vld [vmem:[%s4 + $0x10] sm:$0xff]
  %v169 = vld [vmem:[%s4 + $0x18] sm:$0xff]
  %171 = vset.pattern.permute.xlu0 0
  %172 = vperm.xlu0 %171, %v166
  %v173 = vpop.permute.xlu0 %172
  %176 = vset.pattern.permute.xlu0 0
  %177 = vperm.xlu0 %176, %v167
  %v178 = vpop.permute.xlu0 %177
  %181 = vset.pattern.permute.xlu0 0
  %182 = vperm.xlu0 %181, %v168
  %v183 = vpop.permute.xlu0 %182
  %186 = vset.pattern.permute.xlu0 0
  %187 = vperm.xlu0 %186, %v169
  %v188 = vpop.permute.xlu0 %187
  %vm190 = vcmask 261120
  %v192 = vsel %vm190, %v162, 0
  %v195 = vsel %vm190, %v163, 0
  %v198 = vsel %vm190, %v164, 0
  %v201 = vsel %vm190, %v165, 0
  %203 = vmatprep.subr.mxu0 0.0
  %204 = vmatpush1.msra.mxu0 %v158
  %205 = vmatprep.subr.mxu0 0.0
  %206 = vmatpush1.msra.mxu0 %v159
  %207 = vmatprep.subr.mxu0 0.0
  %208 = vmatpush1.msra.mxu0 %v160
  %209 = vmatprep.subr.mxu0 0.0
  %210 = vmatpush1.msra.mxu0 %v161
  %211 = vmatprep.subr.mxu0 0.0
  %212 = vmatpush1.msra.mxu0 0.0
  %213 = vmatprep.subr.mxu0 0.0
  %214 = vmatpush1.msra.mxu0 0.0
  %215 = vmatprep.subr.mxu0 0.0
  %216 = vmatpush1.msra.mxu0 0.0
  %217 = vmatprep.subr.mxu0 0.0
  %218 = vmatpush1.msra.mxu0 0.0
  %219 = vmatprep.subr.mxu0 0.0
  %220 = vmatpush1.msra.mxu0 0.0
  %221 = vmatprep.subr.mxu0 0.0
  %222 = vmatpush1.msra.mxu0 0.0
  %223 = vmatprep.subr.mxu0 0.0
  %224 = vmatpush1.msra.mxu0 0.0
  %225 = vmatprep.subr.mxu0 0.0
  %226 = vmatpush1.msra.mxu0 0.0
  %227 = vmatprep.subr.mxu0 0.0
  %228 = vmatpush1.msra.mxu0 0.0
  %229 = vmatprep.subr.mxu0 0.0
  %230 = vmatpush1.msra.mxu0 0.0
  %231 = vmatprep.subr.mxu0 0.0
  %232 = vmatpush1.msra.mxu0 0.0
  %233 = vmatprep.subr.mxu0 0.0
  %234 = vmatpush1.msra.mxu0 0.0
  %235 = vmatprep.subr.mxu0 0.0
  %236 = vmatpush1.msra.mxu0 0.0
  %237 = vmatprep.subr.mxu0 0.0
  %238 = vmatpush1.msra.mxu0 0.0
  %239 = vmatprep.subr.mxu0 0.0
  %240 = vmatpush1.msra.mxu0 0.0
  %241 = vmatprep.subr.mxu0 0.0
  %242 = vmatpush1.msra.mxu0 0.0
  %243 = vmatprep.subr.mxu0 0.0
  %244 = vmatpush1.msra.mxu0 0.0
  %245 = vmatprep.subr.mxu0 0.0
  %246 = vmatpush1.msra.mxu0 0.0
  %247 = vmatprep.subr.mxu0 0.0
  %248 = vmatpush1.msra.mxu0 0.0
  %249 = vmatprep.subr.mxu0 0.0
  %250 = vmatpush1.msra.mxu0 0.0
  %251 = vmatprep.subr.mxu0 0.0
  %252 = vmatpush1.msra.mxu0 0.0
  %253 = vmatprep.subr.mxu0 0.0
  %254 = vmatpush1.msra.mxu0 0.0
  %255 = vmatprep.subr.mxu0 0.0
  %256 = vmatpush1.msra.mxu0 0.0
  %257 = vmatprep.subr.mxu0 0.0
  %258 = vmatpush1.msra.mxu0 0.0
  %259 = vmatprep.subr.mxu0 0.0
  %260 = vmatpush1.msra.mxu0 0.0
  %261 = vmatprep.subr.mxu0 0.0
  %262 = vmatpush1.msra.mxu0 0.0
  %263 = vmatprep.subr.mxu0 0.0
  %264 = vmatpush1.msra.mxu0 0.0
  %265 = vmatprep.subr.mxu0 0.0
  %266 = vmatpush1.msra.mxu0 0.0
  %267 = vmatprep.mubr.f32.mxu0 0.0
  %268 = vmatmul.mubr.f32.gmra.mrb[0].mxu0 %v192
  %v269 = vpop.f32.mrb[0].mxu0
  %v270 = vadd.f32 %v173, %v269
  %v271 = vpop.f32.mrb[0].mxu0
  %272 = vmatprep.mubr.f32.mxu0 0.0
  %273 = vmatmul.mubr.f32.gmra.mrb[0].mxu0 %v195
  %v274 = vpop.f32.mrb[0].mxu0
  %v275 = vadd.f32 %v178, %v274
  %v276 = vpop.f32.mrb[0].mxu0
  %277 = vmatprep.mubr.f32.mxu0 0.0
  %278 = vmatmul.mubr.f32.gmra.mrb[0].mxu0 %v198
  %v279 = vpop.f32.mrb[0].mxu0
  %v280 = vadd.f32 %v183, %v279
  %v281 = vpop.f32.mrb[0].mxu0
  %282 = vmatprep.mubr.f32.mxu0 0.0
  %283 = vmatmul.mubr.f32.gmra.mrb[0].mxu0 %v201
  %v284 = vpop.f32.mrb[0].mxu0
  %v285 = vadd.f32 %v188, %v284
  %v286 = vpop.f32.mrb[0].mxu0
  %287 = vdwg.mxu0
  %v288 = vmax.f32 %v270, 0.0
  %v289 = vmax.f32 %v275, 0.0
  %v290 = vmax.f32 %v280, 0.0
  %v291 = vmax.f32 %v285, 0.0
  %v292 = vld [vmem:[%s5] sm:$0xff]
  %v293 = vld [vmem:[%s5 + $0x8] sm:$0xff]
  %v294 = vld [vmem:[%s6] sm:$0xff]
  %v295 = vld [vmem:[%s6 + $0x8] sm:$0xff]
  %297 = vset.pattern.permute.xlu0 0
  %298 = vperm.xlu0 %297, %v294
  %v299 = vpop.permute.xlu0 %298
  %302 = vset.pattern.permute.xlu0 0
  %303 = vperm.xlu0 %302, %v295
  %v304 = vpop.permute.xlu0 %303
  %v307 = vsel %vm190, %v292, 0
  %v310 = vsel %vm190, %v293, 0
  %312 = vmatprep.subr.mxu0 0.0
  %313 = vmatpush1.msra.mxu0 %v288
  %314 = vmatprep.subr.mxu0 0.0
  %315 = vmatpush1.msra.mxu0 %v289
  %316 = vmatprep.subr.mxu0 0.0
  %317 = vmatpush1.msra.mxu0 %v290
  %318 = vmatprep.subr.mxu0 0.0
  %319 = vmatpush1.msra.mxu0 %v291
  %320 = vmatprep.subr.mxu0 0.0
  %321 = vmatpush1.msra.mxu0 0.0
  %322 = vmatprep.subr.mxu0 0.0
  %323 = vmatpush1.msra.mxu0 0.0
  %324 = vmatprep.subr.mxu0 0.0
  %325 = vmatpush1.msra.mxu0 0.0
  %326 = vmatprep.subr.mxu0 0.0
  %327 = vmatpush1.msra.mxu0 0.0
  %328 = vmatprep.subr.mxu0 0.0
  %329 = vmatpush1.msra.mxu0 0.0
  %330 = vmatprep.subr.mxu0 0.0
  %331 = vmatpush1.msra.mxu0 0.0
  %332 = vmatprep.subr.mxu0 0.0
  %333 = vmatpush1.msra.mxu0 0.0
  %334 = vmatprep.subr.mxu0 0.0
  %335 = vmatpush1.msra.mxu0 0.0
  %336 = vmatprep.subr.mxu0 0.0
  %337 = vmatpush1.msra.mxu0 0.0
  %338 = vmatprep.subr.mxu0 0.0
  %339 = vmatpush1.msra.mxu0 0.0
  %340 = vmatprep.subr.mxu0 0.0
  %341 = vmatpush1.msra.mxu0 0.0
  %342 = vmatprep.subr.mxu0 0.0
  %343 = vmatpush1.msra.mxu0 0.0
  %344 = vmatprep.subr.mxu0 0.0
  %345 = vmatpush1.msra.mxu0 0.0
  %346 = vmatprep.subr.mxu0 0.0
  %347 = vmatpush1.msra.mxu0 0.0
  %348 = vmatprep.subr.mxu0 0.0
  %349 = vmatpush1.msra.mxu0 0.0
  %350 = vmatprep.subr.mxu0 0.0
  %351 = vmatpush1.msra.mxu0 0.0
  %352 = vmatprep.subr.mxu0 0.0
  %353 = vmatpush1.msra.mxu0 0.0
  %354 = vmatprep.subr.mxu0 0.0
  %355 = vmatpush1.msra.mxu0 0.0
  %356 = vmatprep.subr.mxu0 0.0
  %357 = vmatpush1.msra.mxu0 0.0
  %358 = vmatprep.subr.mxu0 0.0
  %359 = vmatpush1.msra.mxu0 0.0
  %360 = vmatprep.subr.mxu0 0.0
  %361 = vmatpush1.msra.mxu0 0.0
  %362 = vmatprep.subr.mxu0 0.0
  %363 = vmatpush1.msra.mxu0 0.0
  %364 = vmatprep.subr.mxu0 0.0
  %365 = vmatpush1.msra.mxu0 0.0
  %366 = vmatprep.subr.mxu0 0.0
  %367 = vmatpush1.msra.mxu0 0.0
  %368 = vmatprep.subr.mxu0 0.0
  %369 = vmatpush1.msra.mxu0 0.0
  %370 = vmatprep.subr.mxu0 0.0
  %371 = vmatpush1.msra.mxu0 0.0
  %372 = vmatprep.subr.mxu0 0.0
  %373 = vmatpush1.msra.mxu0 0.0
  %374 = vmatprep.subr.mxu0 0.0
  %375 = vmatpush1.msra.mxu0 0.0
  %376 = vmatprep.mubr.f32.mxu0 0.0
  %377 = vmatmul.mubr.f32.gmra.mrb[0].mxu0 %v307
  %v378 = vpop.f32.mrb[0].mxu0
  %v379 = vadd.f32 %v299, %v378
  %v380 = vpop.f32.mrb[0].mxu0
  %381 = vmatprep.mubr.f32.mxu0 0.0
  %382 = vmatmul.mubr.f32.gmra.mrb[0].mxu0 %v310
  %v383 = vpop.f32.mrb[0].mxu0
  %v384 = vadd.f32 %v304, %v383
  %v385 = vpop.f32.mrb[0].mxu0
  %386 = vdwg.mxu0
  %v387 = vmax.f32 %v384, -20.0
  %v388 = vmin.f32 %v387, 2.0
  %v389 = vmul.f32 %v388, 1.442695
  %v390 = vpow.pop %v389
  %v391 = vmul.f32 %v390, %v29
  %v392 = vadd.f32 %v379, %v391
  %v393 = vmul.f32 %v29, %v29
  %v394 = vmul.f32 %v393, -0.5
  %v395 = vsub.f32 %v394, %v388
  %v396 = vsub.f32 %v395, 0.9189385
  %v397 = vsub.f32 0.6931472, %v392
  %v398 = vmul.f32 %v392, -2.0
  %v399 = vmax.f32 %v398, 0.0
  %v400 = vand.u32 2147483647, %v398
  %v401 = vsub.f32 0.0, %v400
  %v402 = vmul.f32 %v401, 1.442695
  %v403 = vpow.pop %v402
  %v404 = vadd.f32 %v403, 1.0
  %v405 = vlog2.pop %v404
  %v406 = vmul.f32 %v405, 0.6931472
  %v407 = vmul.f32 -0.5, %v403
  %v408 = vadd.f32 %v407, 1.0
  %v409 = vmul.f32 %v408, %v403
  %v410 = vand.u32 2147483647, %v403
  %vm411 = vcmp.lt.f32.partialorder %v410, 0.0004427343
  %v412 = vsel %vm411, %v409, %v406
  %v413 = vadd.f32 %v399, %v412
  %v414 = vsub.f32 %v397, %v413
  %v415 = vmul.f32 %v414, 2.0
  %v416 = vsub.f32 %v396, %v415
  %vm417 = vcmask 31744
  %v418 = vsel %vm417, %v416, 0.0
  %v419 = vrot.slane %v418, 4
  %v420 = vadd.f32 %v418, %v419
  %v421 = vrot.slane %v420, 2
  %v422 = vadd.f32 %v420, %v421
  %v423 = vrot.slane %v422, 1
  %v424 = vadd.f32 %v422, %v423
  %v425 = vtanh.pop %v392
  %426 = vst.msk [vmem:[%s8] sm:$0xff] %vm417, %v425
  %vm427 = vcmask 24576
  %428 = vst.msk [vmem:[%s8 + $0x8] sm:$0x1] %vm427, %v424
  // Predicated region
  $region34: #{tpu_custom_call.1} parent=0 // pred_check
    _
  $region35: #{tpu_custom_call.1} parent=0 // pred_check_branch
    %430 = sbr.rel (0) target = $region37
  $region36: #{tpu_custom_call.1} parent=0 // pred_region
    _
  $region37: #{tpu_custom_call.1} parent=0 // pred_fallthru
    _
  // Predicated region
  $region38: #{tpu_custom_call.1} parent=0 // pred_check
    _
  $region39: #{tpu_custom_call.1} parent=0 // pred_check_branch
    %432 = sbr.rel (0) target = $region41
  $region40: #{tpu_custom_call.1} parent=0 // pred_region
    _
  $region41: #{tpu_custom_call.1} parent=0 // pred_fallthru
    _

</llo_original>
